<compile_context>
chip_gen: v6e
topology: v6e:2x2x1
jax: 0.10.0
libtpu: 0.0.40
codegen_flags: <defaults>
</compile_context>

<pallas_src>
import numpy as np

import jax
import jax.numpy as jnp
from jax import lax
from jax.experimental import pallas as pl
from jax.experimental.pallas import tpu as pltpu


# ---------------------------------------------------------------------------
# Kernel: fused (conv3x3 + folded-BN + ReLU) x 2 for the whole (small) batch
# ---------------------------------------------------------------------------
def _fused_conv_block_kernel(x_ref, w1_ref, b1_ref, w2_ref, b2_ref, mask_ref,
                             o_ref, xp_ref, mid_ref):
    """
    x_ref   : (N, H, W*Cin)        bf16, NHWC with W and C flattened (lane dim)
    w1_ref  : (3, W*Cin,  W*Cout)  bf16 banded weights (BN scale + W-pad folded)
    b1_ref  : (1, W*Cout)          f32 folded bias, tiled per output column
    w2_ref  : (3, W*Cout, W*Cout)  bf16 banded weights for layer 2
    b2_ref  : (1, W*Cout)          f32 folded bias for layer 2
    mask_ref: (N*(H+2)-2, 1)       f32, 1.0 on real rows / 0.0 on pad rows
    o_ref   : (N, H, W*Cout)       f32 lane-dense output
    xp_ref  : VMEM (N*(H+2), W*Cin)  f32 stacked, height-padded input
    mid_ref : VMEM (N*(H+2), W*Cout) f32 stacked, height-padded layer-1 act
    """
    N, H, _ = x_ref.shape
    wcout = o_ref.shape[2]
    Hp = H + 2                      # padded rows per image
    R = N * Hp                      # total stacked padded rows
    M = R - 2                       # rows produced by each banded matmul

    # One zero sweep provides every per-image top/bottom padding row.
    xp_ref[...] = jnp.zeros_like(xp_ref)
    mid_ref[...] = jnp.zeros_like(mid_ref)
    for n in range(N):              # static, N is tiny
        xp_ref[n * Hp + 1:n * Hp + 1 + H, :] = x_ref[n].astype(jnp.float32)

    # ---- ConvBlock 1: 3 banded MXU matmuls over the whole stacked batch ----
    acc = jnp.dot(xp_ref[0:M, :].astype(jnp.bfloat16), w1_ref[0],
                  preferred_element_type=jnp.float32)
    for dy in (1, 2):
        acc += jnp.dot(xp_ref[dy:dy + M, :].astype(jnp.bfloat16), w1_ref[dy],
                       preferred_element_type=jnp.float32)
    # Bias + ReLU; the mask zeroes the junk rows computed at pad positions so
    # they act as layer-2's height padding.
    y1 = jnp.maximum(acc + b1_ref[...], 0.0) * mask_ref[...]
    mid_ref[1:R - 1, :] = y1                    # stays in VMEM (no HBM trip)

    # ---- ConvBlock 2 -------------------------------------------------------
    acc2 = jnp.dot(mid_ref[0:M, :].astype(jnp.bfloat16), w2_ref[0],
                   preferred_element_type=jnp.float32)
    for dy in (1, 2):
        acc2 += jnp.dot(mid_ref[dy:dy + M, :].astype(jnp.bfloat16), w2_ref[dy],
                        preferred_element_type=jnp.float32)
    out = jnp.maximum(acc2 + b2_ref[...], 0.0)
    for n in range(N):
        o_ref[n] = out[n * Hp:n * Hp + H]       # full 128-lane unmasked stores


def _fused_conv_block(x_flat, w1b, b1r, w2b, b2r, mask):
    """x_flat: (N, H, W*Cin) bf16  ->  (N, H, W*Cout) f32."""
    N, H, wcin = x_flat.shape
    wcout = b1r.shape[1]
    Hp = H + 2

    return pl.pallas_call(
        _fused_conv_block_kernel,
        out_shape=jax.ShapeDtypeStruct((N, H, wcout), jnp.float32),
        grid=(1,),   # whole (tiny) problem in one step; tile for real sizes
        in_specs=[
            pl.BlockSpec((N, H, wcin), lambda i: (0, 0, 0)),
            pl.BlockSpec(w1b.shape, lambda i: (0, 0, 0)),
            pl.BlockSpec(b1r.shape, lambda i: (0, 0)),
            pl.BlockSpec(w2b.shape, lambda i: (0, 0, 0)),
            pl.BlockSpec(b2r.shape, lambda i: (0, 0)),
            pl.BlockSpec(mask.shape, lambda i: (0, 0)),
        ],
        out_specs=pl.BlockSpec((N, H, wcout), lambda i: (0, 0, 0)),
        scratch_shapes=[
            pltpu.VMEM((N * Hp, wcin), jnp.float32),
            pltpu.VMEM((N * Hp, wcout), jnp.float32),
        ],
        compiler_params=pltpu.CompilerParams(
            dimension_semantics=("arbitrary",)),
    )(x_flat, w1b, b1r, w2b, b2r, mask)


# ---------------------------------------------------------------------------
# Host-side parameter preparation (BN fold + banded weight layout + row mask)
# ---------------------------------------------------------------------------
def fold_bn(conv_w, conv_b, gamma, beta, mean, var, eps=1e-5):
    """Fold Conv bias + eval-mode BatchNorm2d into the conv weight and a bias."""
    scale = gamma / jnp.sqrt(var + eps)
    w_f = conv_w * scale[None, None, None, :]
    b_f = (conv_b - mean) * scale + beta
    return w_f, b_f


def _build_band_weight(w_hwio, W):
    """(3, 3, ci, co) HWIO -> (3, W*ci, W*co) banded matrices (numpy, exact).

    band[dy][xin*ci + c, x*co + o] = w[dy, xin - x + 1, c, o] when |xin - x| <= 1
    else 0 — the width zero-padding is absorbed into the matrix structure.
    """
    kh, kw, ci, co = w_hwio.shape
    xin = np.arange(W)[:, None]
    xout = np.arange(W)[None, :]
    dx = xin - xout + (kw // 2)
    valid = (dx >= 0) & (dx < kw)
    dxc = np.clip(dx, 0, kw - 1)
    band = np.empty((kh, W * ci, W * co), np.float32)
    for dy in range(kh):
        b4 = w_hwio[dy][dxc] * valid[:, :, None, None]       # (W, W, ci, co)
        band[dy] = b4.transpose(0, 2, 1, 3).reshape(W * ci, W * co)
    return band


def _build_row_mask(N, H):
    """f32 (N*(H+2)-2, 1): 1.0 on real data rows, 0.0 on inter-image pad rows."""
    Hp = H + 2
    r = np.arange(1, N * Hp - 1)                 # padded row indices 1..R-2
    valid = ((r % Hp) >= 1) & ((r % Hp) <= H)
    return valid.astype(np.float32).reshape(-1, 1)


def prepare_kernel_params(p1, p2, W):
    """Fold BN, build banded bf16 weights and tiled f32 bias rows."""
    out = {}
    for tag, p in (("1", p1), ("2", p2)):
        w_f, b_f = fold_bn(p["w"], p["b"], p["gamma"], p["beta"],
                           p["mean"], p["var"])
        band = _build_band_weight(np.asarray(w_f, np.float32), W)
        out["w" + tag] = jnp.asarray(band, jnp.bfloat16)
        out["b" + tag] = jnp.tile(b_f, W).reshape(1, -1).astype(jnp.float32)
    return out


def make_convblock_params(key, cin, cout):
    """Deterministic params for one ConvBlock(cin, cout, k=3)."""
    k_w, k_b, k_g, k_be, k_m, k_v = jax.random.split(key, 6)
    w = jax.random.normal(k_w, (3, 3, cin, cout), jnp.float32) * 0.1   # HWIO
    b = jax.random.normal(k_b, (cout,), jnp.float32) * 0.1
    gamma = 1.0 + 0.1 * jax.random.normal(k_g, (cout,), jnp.float32)
    beta = 0.1 * jax.random.normal(k_be, (cout,), jnp.float32)
    rmean = 0.1 * jax.random.normal(k_m, (cout,), jnp.float32)
    rvar = jnp.abs(1.0 + 0.1 * jax.random.normal(k_v, (cout,), jnp.float32))
    return dict(w=w, b=b, gamma=gamma, beta=beta, mean=rmean, var=rvar)


# ---------------------------------------------------------------------------
# Forward (NCHW in / NCHW out, like the PyTorch module)
# ---------------------------------------------------------------------------
@jax.jit
def conv_block_forward(x_nchw, kp):
    N, cin, H, W = x_nchw.shape
    cout = kp["b2"].shape[1] // W
    # NCHW -> NHWC, flatten (W, C) into the lane dim, bf16 for MXU + half DMA.
    x = jnp.transpose(x_nchw, (0, 2, 3, 1)).reshape(N, H, W * cin)
    x = x.astype(jnp.bfloat16)
    mask = jnp.asarray(_build_row_mask(N, H))          # trace-time constant
    y = _fused_conv_block(x, kp["w1"], kp["b1"], kp["w2"], kp["b2"], mask)
    # Back to the caller's NCHW layout (cheap XLA transpose outside the kernel).
    return jnp.transpose(y.reshape(N, H, W, cout), (0, 3, 1, 2))


# ---------------------------------------------------------------------------
# Pure-JAX reference (lax.conv)
# ---------------------------------------------------------------------------
def _reference_forward(x_nchw, p1, p2, mirror_bf16=True):
    """mirror_bf16=True mimics the kernel's bf16 weight/activation casts."""
    def block(x, p):
        w_f, b_f = fold_bn(p["w"], p["b"], p["gamma"], p["beta"],
                           p["mean"], p["var"])
        if mirror_bf16:
            w_f = w_f.astype(jnp.bfloat16)
            x = x.astype(jnp.bfloat16)
        y = lax.conv_general_dilated(
            x, w_f, window_strides=(1, 1), padding=((1, 1), (1, 1)),
            dimension_numbers=("NHWC", "HWIO", "NHWC"),
            preferred_element_type=jnp.float32)
        return jnp.maximum(y + b_f, 0.0)

    x = jnp.transpose(x_nchw, (0, 2, 3, 1))
    x = block(x, p1)
    x = block(x, p2)
    return jnp.transpose(x, (0, 3, 1, 2))


if __name__ == "__main__":
    key = jax.random.PRNGKey(0)
    k_x, k_p1, k_p2 = jax.random.split(key, 3)

    N, CIN, COUT, H, W = 2, 4, 8, 16, 16           # W*COUT = 128 (lane-dense)
    x = jax.random.normal(k_x, (N, CIN, H, W), jnp.float32)   # NCHW like torch

    p1 = make_convblock_params(k_p1, CIN, COUT)
    p2 = make_convblock_params(k_p2, COUT, COUT)
    kp = prepare_kernel_params(p1, p2, W)

    out = jax.block_until_ready(conv_block_forward(x, kp))
    assert out.shape == (N, COUT, H, W)

    ref_bf16 = jax.block_until_ready(_reference_forward(x, p1, p2, True))
    ref_f32 = jax.block_until_ready(_reference_forward(x, p1, p2, False))
    assert jnp.allclose(out, ref_bf16, atol=1e-2, rtol=1e-2), "mismatch vs bf16 ref"
    assert jnp.allclose(out, ref_f32, atol=6e-2, rtol=6e-2), "mismatch vs f32 ref"

    print("KERNEL_OK")
</pallas_src>

<mosaic_0001>
module attributes {stable_mosaic.version = 11 : i64} {
  func.func @_fused_conv_block_kernel(%arg0: i32, %arg1: memref<2x16x64xbf16, #tpu.memory_space<vmem>>, %arg2: memref<3x64x128xbf16, #tpu.memory_space<vmem>>, %arg3: memref<1x128xf32, #tpu.memory_space<vmem>>, %arg4: memref<3x128x128xbf16, #tpu.memory_space<vmem>>, %arg5: memref<1x128xf32, #tpu.memory_space<vmem>>, %arg6: memref<34x1xf32, #tpu.memory_space<vmem>>, %arg7: memref<2x16x128xf32, #tpu.memory_space<vmem>>, %arg8: memref<36x64xf32, #tpu.memory_space<vmem>>, %arg9: memref<36x128xf32, #tpu.memory_space<vmem>>) attributes {dimension_semantics = [#tpu.dimension_semantics<arbitrary>], iteration_bounds = array<i64: 1>, scalar_prefetch = 0 : i64, scratch_operands = 2 : i64, tpu.core_type = #tpu.core_type<tc>, window_params = [{pipeline_mode = #tpu.pipeline_mode<synchronous>, transform_indices = @transform_0, window_bounds = array<i64: 2, 16, 64>}, {pipeline_mode = #tpu.pipeline_mode<synchronous>, transform_indices = @transform_1, window_bounds = array<i64: 3, 64, 128>}, {pipeline_mode = #tpu.pipeline_mode<synchronous>, transform_indices = @transform_2, window_bounds = array<i64: 1, 128>}, {pipeline_mode = #tpu.pipeline_mode<synchronous>, transform_indices = @transform_3, window_bounds = array<i64: 3, 128, 128>}, {pipeline_mode = #tpu.pipeline_mode<synchronous>, transform_indices = @transform_4, window_bounds = array<i64: 1, 128>}, {pipeline_mode = #tpu.pipeline_mode<synchronous>, transform_indices = @transform_5, window_bounds = array<i64: 34, 1>}, {pipeline_mode = #tpu.pipeline_mode<synchronous>, transform_indices = @transform_6, window_bounds = array<i64: 2, 16, 128>}]} {
    %cst = arith.constant 0.000000e+00 : f32
    %0 = vector.broadcast %cst : f32 to vector<36x64xf32>
    %c0 = arith.constant 0 : index
    %c0_0 = arith.constant 0 : index
    %1 = vector.load %arg8[%c0, %c0_0] : memref<36x64xf32, #tpu.memory_space<vmem>>, vector<36x64xf32>
    tpu.vector_store %arg8[%c0, %c0_0], %0 {strides = array<i32>} : memref<36x64xf32, #tpu.memory_space<vmem>>, vector<36x64xf32>,
    %cst_1 = arith.constant 0.000000e+00 : f32
    %2 = vector.broadcast %cst_1 : f32 to vector<36x128xf32>
    %c0_2 = arith.constant 0 : index
    %c0_3 = arith.constant 0 : index
    %3 = vector.load %arg9[%c0_2, %c0_3] : memref<36x128xf32, #tpu.memory_space<vmem>>, vector<36x128xf32>
    tpu.vector_store %arg9[%c0_2, %c0_3], %2 {strides = array<i32>} : memref<36x128xf32, #tpu.memory_space<vmem>>, vector<36x128xf32>,
    %c0_4 = arith.constant 0 : index
    %c0_5 = arith.constant 0 : index
    %c0_6 = arith.constant 0 : index
    %4 = vector.load %arg1[%c0_4, %c0_5, %c0_6] : memref<2x16x64xbf16, #tpu.memory_space<vmem>>, vector<1x16x64xbf16>
    %5 = vector.shape_cast %4 : vector<1x16x64xbf16> to vector<16x64xbf16>
    %6 = arith.extf %5 : vector<16x64xbf16> to vector<16x64xf32>
    %c1 = arith.constant 1 : index
    %c0_7 = arith.constant 0 : index
    %7 = vector.load %arg8[%c1, %c0_7] : memref<36x64xf32, #tpu.memory_space<vmem>>, vector<16x64xf32>
    tpu.vector_store %arg8[%c1, %c0_7], %6 {strides = array<i32>} : memref<36x64xf32, #tpu.memory_space<vmem>>, vector<16x64xf32>,
    %c1_8 = arith.constant 1 : index
    %c0_9 = arith.constant 0 : index
    %c0_10 = arith.constant 0 : index
    %8 = vector.load %arg1[%c1_8, %c0_9, %c0_10] : memref<2x16x64xbf16, #tpu.memory_space<vmem>>, vector<1x16x64xbf16>
    %9 = vector.shape_cast %8 : vector<1x16x64xbf16> to vector<16x64xbf16>
    %10 = arith.extf %9 : vector<16x64xbf16> to vector<16x64xf32>
    %c19 = arith.constant 19 : index
    %c0_11 = arith.constant 0 : index
    %11 = vector.load %arg8[%c19, %c0_11] : memref<36x64xf32, #tpu.memory_space<vmem>>, vector<16x64xf32>
    tpu.vector_store %arg8[%c19, %c0_11], %10 {strides = array<i32>} : memref<36x64xf32, #tpu.memory_space<vmem>>, vector<16x64xf32>,
    %c0_12 = arith.constant 0 : index
    %c0_13 = arith.constant 0 : index
    %12 = vector.load %arg8[%c0_12, %c0_13] : memref<36x64xf32, #tpu.memory_space<vmem>>, vector<34x64xf32>
    %13 = arith.truncf %12 : vector<34x64xf32> to vector<34x64xbf16>
    %c0_14 = arith.constant 0 : index
    %c0_15 = arith.constant 0 : index
    %c0_16 = arith.constant 0 : index
    %14 = vector.load %arg2[%c0_14, %c0_15, %c0_16] : memref<3x64x128xbf16, #tpu.memory_space<vmem>>, vector<1x64x128xbf16>
    %15 = vector.shape_cast %14 : vector<1x64x128xbf16> to vector<64x128xbf16>
    %cst_17 = arith.constant dense<0.000000e+00> : vector<34x128xf32>
    %16 = tpu.matmul %13, %15, %cst_17 {dimension_numbers = #tpu.dot_dimension_numbers<[1], [0], [0], [1], [0, 0, 1, 1], [], []>} : vector<34x64xbf16>, vector<64x128xbf16>, vector<34x128xf32> -> vector<34x128xf32>
    %c1_18 = arith.constant 1 : index
    %c0_19 = arith.constant 0 : index
    %17 = vector.load %arg8[%c1_18, %c0_19] : memref<36x64xf32, #tpu.memory_space<vmem>>, vector<34x64xf32>
    %18 = arith.truncf %17 : vector<34x64xf32> to vector<34x64xbf16>
    %c1_20 = arith.constant 1 : index
    %c0_21 = arith.constant 0 : index
    %c0_22 = arith.constant 0 : index
    %19 = vector.load %arg2[%c1_20, %c0_21, %c0_22] : memref<3x64x128xbf16, #tpu.memory_space<vmem>>, vector<1x64x128xbf16>
    %20 = vector.shape_cast %19 : vector<1x64x128xbf16> to vector<64x128xbf16>
    %cst_23 = arith.constant dense<0.000000e+00> : vector<34x128xf32>
    %21 = tpu.matmul %18, %20, %cst_23 {dimension_numbers = #tpu.dot_dimension_numbers<[1], [0], [0], [1], [0, 0, 1, 1], [], []>} : vector<34x64xbf16>, vector<64x128xbf16>, vector<34x128xf32> -> vector<34x128xf32>
    %22 = arith.addf %16, %21 : vector<34x128xf32>
    %c2 = arith.constant 2 : index
    %c0_24 = arith.constant 0 : index
    %23 = vector.load %arg8[%c2, %c0_24] : memref<36x64xf32, #tpu.memory_space<vmem>>, vector<34x64xf32>
    %24 = arith.truncf %23 : vector<34x64xf32> to vector<34x64xbf16>
    %c2_25 = arith.constant 2 : index
    %c0_26 = arith.constant 0 : index
    %c0_27 = arith.constant 0 : index
    %25 = vector.load %arg2[%c2_25, %c0_26, %c0_27] : memref<3x64x128xbf16, #tpu.memory_space<vmem>>, vector<1x64x128xbf16>
    %26 = vector.shape_cast %25 : vector<1x64x128xbf16> to vector<64x128xbf16>
    %cst_28 = arith.constant dense<0.000000e+00> : vector<34x128xf32>
    %27 = tpu.matmul %24, %26, %cst_28 {dimension_numbers = #tpu.dot_dimension_numbers<[1], [0], [0], [1], [0, 0, 1, 1], [], []>} : vector<34x64xbf16>, vector<64x128xbf16>, vector<34x128xf32> -> vector<34x128xf32>
    %28 = arith.addf %22, %27 : vector<34x128xf32>
    %c0_29 = arith.constant 0 : index
    %c0_30 = arith.constant 0 : index
    %29 = vector.load %arg3[%c0_29, %c0_30] : memref<1x128xf32, #tpu.memory_space<vmem>>, vector<1x128xf32>
    %30 = vector.broadcast %29 : vector<1x128xf32> to vector<34x128xf32>
    %31 = arith.addf %28, %30 : vector<34x128xf32>
    %cst_31 = arith.constant 0.000000e+00 : f32
    %32 = vector.broadcast %cst_31 : f32 to vector<34x128xf32>
    %33 = arith.maximumf %31, %32 : vector<34x128xf32>
    %c0_32 = arith.constant 0 : index
    %c0_33 = arith.constant 0 : index
    %34 = vector.load %arg6[%c0_32, %c0_33] : memref<34x1xf32, #tpu.memory_space<vmem>>, vector<34x1xf32>
    %35 = vector.broadcast %34 : vector<34x1xf32> to vector<34x128xf32>
    %36 = arith.mulf %33, %35 : vector<34x128xf32>
    %c1_34 = arith.constant 1 : index
    %c0_35 = arith.constant 0 : index
    %37 = vector.load %arg9[%c1_34, %c0_35] : memref<36x128xf32, #tpu.memory_space<vmem>>, vector<34x128xf32>
    tpu.vector_store %arg9[%c1_34, %c0_35], %36 {strides = array<i32>} : memref<36x128xf32, #tpu.memory_space<vmem>>, vector<34x128xf32>,
    %c0_36 = arith.constant 0 : index
    %c0_37 = arith.constant 0 : index
    %38 = vector.load %arg9[%c0_36, %c0_37] : memref<36x128xf32, #tpu.memory_space<vmem>>, vector<34x128xf32>
    %39 = arith.truncf %38 : vector<34x128xf32> to vector<34x128xbf16>
    %c0_38 = arith.constant 0 : index
    %c0_39 = arith.constant 0 : index
    %c0_40 = arith.constant 0 : index
    %40 = vector.load %arg4[%c0_38, %c0_39, %c0_40] : memref<3x128x128xbf16, #tpu.memory_space<vmem>>, vector<1x128x128xbf16>
    %41 = vector.shape_cast %40 : vector<1x128x128xbf16> to vector<128x128xbf16>
    %cst_41 = arith.constant dense<0.000000e+00> : vector<34x128xf32>
    %42 = tpu.matmul %39, %41, %cst_41 {dimension_numbers = #tpu.dot_dimension_numbers<[1], [0], [0], [1], [0, 0, 1, 1], [], []>} : vector<34x128xbf16>, vector<128x128xbf16>, vector<34x128xf32> -> vector<34x128xf32>
    %c1_42 = arith.constant 1 : index
    %c0_43 = arith.constant 0 : index
    %43 = vector.load %arg9[%c1_42, %c0_43] : memref<36x128xf32, #tpu.memory_space<vmem>>, vector<34x128xf32>
    %44 = arith.truncf %43 : vector<34x128xf32> to vector<34x128xbf16>
    %c1_44 = arith.constant 1 : index
    %c0_45 = arith.constant 0 : index
    %c0_46 = arith.constant 0 : index
    %45 = vector.load %arg4[%c1_44, %c0_45, %c0_46] : memref<3x128x128xbf16, #tpu.memory_space<vmem>>, vector<1x128x128xbf16>
    %46 = vector.shape_cast %45 : vector<1x128x128xbf16> to vector<128x128xbf16>
    %cst_47 = arith.constant dense<0.000000e+00> : vector<34x128xf32>
    %47 = tpu.matmul %44, %46, %cst_47 {dimension_numbers = #tpu.dot_dimension_numbers<[1], [0], [0], [1], [0, 0, 1, 1], [], []>} : vector<34x128xbf16>, vector<128x128xbf16>, vector<34x128xf32> -> vector<34x128xf32>
    %48 = arith.addf %42, %47 : vector<34x128xf32>
    %c2_48 = arith.constant 2 : index
    %c0_49 = arith.constant 0 : index
    %49 = vector.load %arg9[%c2_48, %c0_49] : memref<36x128xf32, #tpu.memory_space<vmem>>, vector<34x128xf32>
    %50 = arith.truncf %49 : vector<34x128xf32> to vector<34x128xbf16>
    %c2_50 = arith.constant 2 : index
    %c0_51 = arith.constant 0 : index
    %c0_52 = arith.constant 0 : index
    %51 = vector.load %arg4[%c2_50, %c0_51, %c0_52] : memref<3x128x128xbf16, #tpu.memory_space<vmem>>, vector<1x128x128xbf16>
    %52 = vector.shape_cast %51 : vector<1x128x128xbf16> to vector<128x128xbf16>
    %cst_53 = arith.constant dense<0.000000e+00> : vector<34x128xf32>
    %53 = tpu.matmul %50, %52, %cst_53 {dimension_numbers = #tpu.dot_dimension_numbers<[1], [0], [0], [1], [0, 0, 1, 1], [], []>} : vector<34x128xbf16>, vector<128x128xbf16>, vector<34x128xf32> -> vector<34x128xf32>
    %54 = arith.addf %48, %53 : vector<34x128xf32>
    %c0_54 = arith.constant 0 : index
    %c0_55 = arith.constant 0 : index
    %55 = vector.load %arg5[%c0_54, %c0_55] : memref<1x128xf32, #tpu.memory_space<vmem>>, vector<1x128xf32>
    %56 = vector.broadcast %55 : vector<1x128xf32> to vector<34x128xf32>
    %57 = arith.addf %54, %56 : vector<34x128xf32>
    %cst_56 = arith.constant 0.000000e+00 : f32
    %58 = vector.broadcast %cst_56 : f32 to vector<34x128xf32>
    %59 = arith.maximumf %57, %58 : vector<34x128xf32>
    %60 = vector.extract_strided_slice %59 {offsets = [0, 0], sizes = [16, 128], strides = [1, 1]} : vector<34x128xf32> to vector<16x128xf32>
    %c0_57 = arith.constant 0 : index
    %c0_58 = arith.constant 0 : index
    %c0_59 = arith.constant 0 : index
    %61 = vector.load %arg7[%c0_57, %c0_58, %c0_59] : memref<2x16x128xf32, #tpu.memory_space<vmem>>, vector<1x16x128xf32>
    %62 = vector.shape_cast %61 : vector<1x16x128xf32> to vector<16x128xf32>
    %63 = vector.shape_cast %60 : vector<16x128xf32> to vector<1x16x128xf32>
    tpu.vector_store %arg7[%c0_57, %c0_58, %c0_59], %63 {strides = array<i32>} : memref<2x16x128xf32, #tpu.memory_space<vmem>>, vector<1x16x128xf32>,
    %64 = vector.extract_strided_slice %59 {offsets = [18, 0], sizes = [16, 128], strides = [1, 1]} : vector<34x128xf32> to vector<16x128xf32>
    %c1_60 = arith.constant 1 : index
    %c0_61 = arith.constant 0 : index
    %c0_62 = arith.constant 0 : index
    %65 = vector.load %arg7[%c1_60, %c0_61, %c0_62] : memref<2x16x128xf32, #tpu.memory_space<vmem>>, vector<1x16x128xf32>
    %66 = vector.shape_cast %65 : vector<1x16x128xf32> to vector<16x128xf32>
    %67 = vector.shape_cast %64 : vector<16x128xf32> to vector<1x16x128xf32>
    tpu.vector_store %arg7[%c1_60, %c0_61, %c0_62], %67 {strides = array<i32>} : memref<2x16x128xf32, #tpu.memory_space<vmem>>, vector<1x16x128xf32>,
    return
  }
  func.func @transform_0(%arg0: i32) -> (i32, i32, i32) {
    %c0_i32 = arith.constant 0 : i32
    %c0_i32_0 = arith.constant 0 : i32
    %c0_i32_1 = arith.constant 0 : i32
    %c0_i32_2 = arith.constant 0 : i32
    return %c0_i32, %c0_i32_0, %c0_i32_1 : i32, i32, i32
  }
  func.func @transform_1(%arg0: i32) -> (i32, i32, i32) {
    %c0_i32 = arith.constant 0 : i32
    %c0_i32_0 = arith.constant 0 : i32
    %c0_i32_1 = arith.constant 0 : i32
    %c0_i32_2 = arith.constant 0 : i32
    return %c0_i32, %c0_i32_0, %c0_i32_1 : i32, i32, i32
  }
  func.func @transform_2(%arg0: i32) -> (i32, i32) {
    %c0_i32 = arith.constant 0 : i32
    %c0_i32_0 = arith.constant 0 : i32
    %c0_i32_1 = arith.constant 0 : i32
    return %c0_i32, %c0_i32_0 : i32, i32
  }
  func.func @transform_3(%arg0: i32) -> (i32, i32, i32) {
    %c0_i32 = arith.constant 0 : i32
    %c0_i32_0 = arith.constant 0 : i32
    %c0_i32_1 = arith.constant 0 : i32
    %c0_i32_2 = arith.constant 0 : i32
    return %c0_i32, %c0_i32_0, %c0_i32_1 : i32, i32, i32
  }
  func.func @transform_4(%arg0: i32) -> (i32, i32) {
    %c0_i32 = arith.constant 0 : i32
    %c0_i32_0 = arith.constant 0 : i32
    %c0_i32_1 = arith.constant 0 : i32
    return %c0_i32, %c0_i32_0 : i32, i32
  }
  func.func @transform_5(%arg0: i32) -> (i32, i32) {
    %c0_i32 = arith.constant 0 : i32
    %c0_i32_0 = arith.constant 0 : i32
    %c0_i32_1 = arith.constant 0 : i32
    return %c0_i32, %c0_i32_0 : i32, i32
  }
  func.func @transform_6(%arg0: i32) -> (i32, i32, i32) {
    %c0_i32 = arith.constant 0 : i32
    %c0_i32_0 = arith.constant 0 : i32
    %c0_i32_1 = arith.constant 0 : i32
    %c0_i32_2 = arith.constant 0 : i32
    return %c0_i32, %c0_i32_0, %c0_i32_1 : i32, i32, i32
  }
}

</mosaic_0001>

<llo_original>
// kernel: conv_block_forward.1
$region0: #{conv_block_forward.1}
  #allocation0 [shape = 'u32[]', space=smem, size = 0x4, offset = 0x4, fixed_abs, tag = 'smem constant byte address 0x4 - core index']
  #allocation1 [shape = 'u32[144,128]{1,0:T(1,128)}', space=vmem, size = 0x12000, scoped, tag = 'internal scratch']
  #allocation2 [shape = 'f32[36,64]{1,0:T(8,128)}', space=vmem, size = 0x5000, scoped, tag = 'scratch operand']
  #allocation3 [shape = 'f32[36,128]{1,0:T(8,128)}', space=vmem, size = 0x5000, scoped, tag = 'scratch operand']
  %s0 = inlined_call_operand.vmem [shape: bf16[2,16,64], index: 0, kind: input, shape index: {}]
  %s1 = inlined_call_operand.vmem [shape: bf16[3,64,128], index: 1, kind: input, shape index: {}]
  %s2 = inlined_call_operand.vmem [shape: f32[1,128], index: 2, kind: input, shape index: {}]
  %s3 = inlined_call_operand.vmem [shape: bf16[3,128,128], index: 3, kind: input, shape index: {}]
  %s4 = inlined_call_operand.vmem [shape: f32[1,128], index: 4, kind: input, shape index: {}]
  %s5 = inlined_call_operand.vmem [shape: f32[34,1], index: 5, kind: input, shape index: {}]
  %s6 = inlined_call_operand.vmem [shape: f32[2,16,128], index: 6, kind: output, shape index: {}]
  %s7 = sld [smem:[#allocation0]]
  $region34: #{conv_block_forward.1} parent=0
    _
  %s9 = ssub.s32 1, %s7
  %s10 = scalar_select 0, %s9, %s7
  // Predicated region
  $region2: #{conv_block_forward.1} parent=0 // pred_check
    _
  $region3: #{conv_block_forward.1} parent=0 // pred_check_branch
    %12 = sbr.rel (0) target = $region5
  $region4: #{conv_block_forward.1} parent=0 // pred_region
    _
  $region5: #{conv_block_forward.1} parent=0 // pred_fallthru
    _
  // Predicated region
  $region6: #{conv_block_forward.1} parent=0 // pred_check
    _
  $region7: #{conv_block_forward.1} parent=0 // pred_check_branch
    %14 = sbr.rel (0) target = $region9
  $region8: #{conv_block_forward.1} parent=0 // pred_region
    _
  $region9: #{conv_block_forward.1} parent=0 // pred_fallthru
    _
  // Predicated region
  $region10: #{conv_block_forward.1} parent=0 // pred_check
    _
  $region11: #{conv_block_forward.1} parent=0 // pred_check_branch
    %16 = sbr.rel (0) target = $region13
  $region12: #{conv_block_forward.1} parent=0 // pred_region
    _
  $region13: #{conv_block_forward.1} parent=0 // pred_fallthru
    _
  // Predicated region
  $region14: #{conv_block_forward.1} parent=0 // pred_check
    _
  $region15: #{conv_block_forward.1} parent=0 // pred_check_branch
    %18 = sbr.rel (0) target = $region17
  $region16: #{conv_block_forward.1} parent=0 // pred_region
    _
  $region17: #{conv_block_forward.1} parent=0 // pred_fallthru
    _
  // Predicated region
  $region18: #{conv_block_forward.1} parent=0 // pred_check
    _
  $region19: #{conv_block_forward.1} parent=0 // pred_check_branch
    %20 = sbr.rel (0) target = $region21
  $region20: #{conv_block_forward.1} parent=0 // pred_region
    _
  $region21: #{conv_block_forward.1} parent=0 // pred_fallthru
    _
  // Predicated region
  $region22: #{conv_block_forward.1} parent=0 // pred_check
    _
  $region23: #{conv_block_forward.1} parent=0 // pred_check_branch
    %22 = sbr.rel (0) target = $region25
  $region24: #{conv_block_forward.1} parent=0 // pred_region
    _
  $region25: #{conv_block_forward.1} parent=0 // pred_fallthru
    _
  %vm24 = vcmask 523264
  %25 = vst.msk [vmem:[#allocation2] sm:$0xff] %vm24, 0.0
  %26 = vst.msk [vmem:[#allocation2 + $0x8] sm:$0xff] %vm24, 0.0
  %27 = vst.msk [vmem:[#allocation2 + $0x10] sm:$0xff] %vm24, 0.0
  %28 = vst.msk [vmem:[#allocation2 + $0x18] sm:$0xff] %vm24, 0.0
  %vm29 = vcmask 519168
  %30 = vst.msk [vmem:[#allocation2 + $0x20] sm:$0xf] %vm29, 0.0
  %31 = vst [vmem:[#allocation3] sm:$0xff] 0.0
  %32 = vst [vmem:[#allocation3 + $0x8] sm:$0xff] 0.0
  %33 = vst [vmem:[#allocation3 + $0x10] sm:$0xff] 0.0
  %34 = vst [vmem:[#allocation3 + $0x18] sm:$0xff] 0.0
  %35 = vst [vmem:[#allocation3 + $0x20] sm:$0xf] 0.0
  %v36 = vld [vmem:[%s0] sm:$0xf]
  %v37 = vld [vmem:[%s0 + $0x4] sm:$0xf]
  %v38 = vunpack.c.l.bf16 %v36
  %v39 = vunpack.c.l.bf16 %v37
  %40 = vst.msk [vmem:[#allocation2 + $0x1] sm:$0xff] %vm24, %v38
  %41 = vst.msk [vmem:[#allocation2 + $0x9] sm:$0xff] %vm24, %v39
  %s42 = scalar_lea.vmem %s0, 8
  %v43 = vld [vmem:[%s42] sm:$0xf]
  %v44 = vld [vmem:[%s42 + $0x4] sm:$0xf]
  %v45 = vunpack.c.l.bf16 %v43
  %v46 = vunpack.c.l.bf16 %v44
  %47 = vst.msk [vmem:[#allocation2 + $0x13] sm:$0xff] %vm24, %v45
  %48 = vst.msk [vmem:[#allocation2 + $0x1b] sm:$0xff] %vm24, %v46
  %v49 = vld [vmem:[#allocation2] sm:$0xff]
  %v50 = vld [vmem:[#allocation2 + $0x8] sm:$0xff]
  %v51 = vld [vmem:[#allocation2 + $0x10] sm:$0xff]
  %v52 = vld [vmem:[#allocation2 + $0x18] sm:$0xff]
  %v53 = vld [vmem:[#allocation2 + $0x20] sm:$0x3]
  %v54 = vpack.c.bf16 %v50, %v49
  %v55 = vpack.c.bf16 %v52, %v51
  %v56 = vpack.c.bf16 %v53, %v53
  %v57 = vld [vmem:[%s1] sm:$0xf]
  %v58 = vld [vmem:[%s1 + $0x4] sm:$0xf]
  %v59 = vld [vmem:[%s1 + $0x8] sm:$0xf]
  %v60 = vld [vmem:[%s1 + $0xc] sm:$0xf]
  %v61 = vld [vmem:[%s1 + $0x10] sm:$0xf]
  %v62 = vld [vmem:[%s1 + $0x14] sm:$0xf]
  %v63 = vld [vmem:[%s1 + $0x18] sm:$0xf]
  %v64 = vld [vmem:[%s1 + $0x1c] sm:$0xf]
  %v65 = vld [vmem:[#allocation2 + $0x1] sm:$0xff]
  %v66 = vld [vmem:[#allocation2 + $0x9] sm:$0xff]
  %v67 = vld [vmem:[#allocation2 + $0x11] sm:$0xff]
  %v68 = vld [vmem:[#allocation2 + $0x19] sm:$0xff]
  %v69 = vld [vmem:[#allocation2 + $0x21] sm:$0x3]
  %v70 = vpack.c.bf16 %v66, %v65
  %v71 = vpack.c.bf16 %v68, %v67
  %v72 = vpack.c.bf16 %v69, %v69
  %s73 = scalar_lea.vmem %s1, 32
  %v74 = vld [vmem:[%s73] sm:$0xf]
  %v75 = vld [vmem:[%s73 + $0x4] sm:$0xf]
  %v76 = vld [vmem:[%s73 + $0x8] sm:$0xf]
  %v77 = vld [vmem:[%s73 + $0xc] sm:$0xf]
  %v78 = vld [vmem:[%s73 + $0x10] sm:$0xf]
  %v79 = vld [vmem:[%s73 + $0x14] sm:$0xf]
  %v80 = vld [vmem:[%s73 + $0x18] sm:$0xf]
  %v81 = vld [vmem:[%s73 + $0x1c] sm:$0xf]
  %v90 = vunpack.c.l.b16 %v74
  %v91 = vunpack.c.l.b16 %v75
  %v92 = vunpack.c.l.b16 %v76
  %v93 = vunpack.c.l.b16 %v77
  %v94 = vunpack.c.l.b16 %v78
  %v95 = vunpack.c.l.b16 %v79
  %v96 = vunpack.c.l.b16 %v80
  %v97 = vunpack.c.l.b16 %v81
  %v98 = vpack.c.b16 %v91, %v90
  %v99 = vpack.c.b16 %v93, %v92
  %v100 = vpack.c.b16 %v95, %v94
  %v101 = vpack.c.b16 %v97, %v96
  %v107 = vsel %vm24, %v70, 0
  %v110 = vsel %vm24, %v71, 0
  %v113 = vsel %vm24, %v72, 0
  %115 = vmatprep.subr.bf16.mxu0 0
  %116 = vmatpush1.bf16.msra.mxu0 0
  %117 = vmatprep.subr.bf16.mxu0 0
  %118 = vmatpush1.bf16.msra.mxu0 0
  %119 = vmatprep.subr.bf16.mxu0 0
  %120 = vmatpush1.bf16.msra.mxu0 0
  %121 = vmatprep.subr.bf16.mxu0 0
  %122 = vmatpush1.bf16.msra.mxu0 0
  %123 = vmatprep.subr.bf16.mxu0 0
  %124 = vmatpush1.bf16.msra.mxu0 %v101
  %125 = vmatprep.subr.bf16.mxu0 0
  %126 = vmatpush1.bf16.msra.mxu0 %v100
  %127 = vmatprep.subr.bf16.mxu0 0
  %128 = vmatpush1.bf16.msra.mxu0 %v99
  %129 = vmatprep.subr.bf16.mxu0 0
  %130 = vmatpush1.bf16.msra.mxu0 %v98
  %131 = vmatprep.subr.bf16.mxu0 0
  %132 = vmatpush2.bf16.msra.mxu0 0
  %133 = vmatprep.subr.bf16.mxu0 0
  %134 = vmatpush2.bf16.msra.mxu0 0
  %135 = vmatprep.subr.bf16.mxu0 0
  %136 = vmatpush2.bf16.msra.mxu0 0
  %137 = vmatprep.subr.bf16.mxu0 0
  %138 = vmatpush2.bf16.msra.mxu0 0
  %139 = vmatprep.subr.bf16.mxu0 0
  %140 = vmatpush2.bf16.msra.mxu0 0
  %141 = vmatprep.subr.bf16.mxu0 0
  %142 = vmatpush2.bf16.msra.mxu0 0
  %143 = vmatprep.subr.bf16.mxu0 0
  %144 = vmatpush2.bf16.msra.mxu0 0
  %145 = vmatprep.subr.bf16.mxu0 0
  %146 = vmatpush2.bf16.msra.mxu0 0
  %147 = vmatprep.mubr.bf16.mxu0 0
  %148 = vmatmul.mubr.bf16.gmra.mxu0 %v107
  %v149 = vpop.f32.mrf.mxu0
  %v150 = vadd.f32 0.0, %v149
  %v151 = vpop.f32.mrf.mxu0
  %v152 = vpop.f32.mrf.mxu0
  %v153 = vadd.f32 0.0, %v152
  %v154 = vpop.f32.mrf.mxu0
  %155 = vmatprep.mubr.bf16.mxu0 0
  %156 = vmatmul.mubr.bf16.gmra.mxu0 %v110
  %v157 = vpop.f32.mrf.mxu0
  %v158 = vadd.f32 0.0, %v157
  %v159 = vpop.f32.mrf.mxu0
  %v160 = vpop.f32.mrf.mxu0
  %v161 = vadd.f32 0.0, %v160
  %v162 = vpop.f32.mrf.mxu0
  %163 = vmatprep.mubr.bf16.mxu0 0
  %164 = vmatmul.mubr.bf16.gmra.mxu0 %v113
  %v165 = vpop.f32.mrf.mxu0
  %v166 = vadd.f32 0.0, %v165
  %v167 = vpop.f32.mrf.mxu0
  %v168 = vpop.f32.mrf.mxu0
  %v169 = vpop.f32.mrf.mxu0
  %170 = vdwg.mxu0
  %v179 = vunpack.c.l.b16 %v57
  %v180 = vunpack.c.l.b16 %v58
  %v181 = vunpack.c.l.b16 %v59
  %v182 = vunpack.c.l.b16 %v60
  %v183 = vunpack.c.l.b16 %v61
  %v184 = vunpack.c.l.b16 %v62
  %v185 = vunpack.c.l.b16 %v63
  %v186 = vunpack.c.l.b16 %v64
  %v187 = vpack.c.b16 %v180, %v179
  %v188 = vpack.c.b16 %v182, %v181
  %v189 = vpack.c.b16 %v184, %v183
  %v190 = vpack.c.b16 %v186, %v185
  %v196 = vsel %vm24, %v54, 0
  %v199 = vsel %vm24, %v55, 0
  %v202 = vsel %vm24, %v56, 0
  %204 = vmatprep.subr.bf16.mxu0 0
  %205 = vmatpush1.bf16.msra.mxu0 0
  %206 = vmatprep.subr.bf16.mxu0 0
  %207 = vmatpush1.bf16.msra.mxu0 0
  %208 = vmatprep.subr.bf16.mxu0 0
  %209 = vmatpush1.bf16.msra.mxu0 0
  %210 = vmatprep.subr.bf16.mxu0 0
  %211 = vmatpush1.bf16.msra.mxu0 0
  %212 = vmatprep.subr.bf16.mxu0 0
  %213 = vmatpush1.bf16.msra.mxu0 %v190
  %214 = vmatprep.subr.bf16.mxu0 0
  %215 = vmatpush1.bf16.msra.mxu0 %v189
  %216 = vmatprep.subr.bf16.mxu0 0
  %217 = vmatpush1.bf16.msra.mxu0 %v188
  %218 = vmatprep.subr.bf16.mxu0 0
  %219 = vmatpush1.bf16.msra.mxu0 %v187
  %220 = vmatprep.subr.bf16.mxu0 0
  %221 = vmatpush2.bf16.msra.mxu0 0
  %222 = vmatprep.subr.bf16.mxu0 0
  %223 = vmatpush2.bf16.msra.mxu0 0
  %224 = vmatprep.subr.bf16.mxu0 0
  %225 = vmatpush2.bf16.msra.mxu0 0
  %226 = vmatprep.subr.bf16.mxu0 0
  %227 = vmatpush2.bf16.msra.mxu0 0
  %228 = vmatprep.subr.bf16.mxu0 0
  %229 = vmatpush2.bf16.msra.mxu0 0
  %230 = vmatprep.subr.bf16.mxu0 0
  %231 = vmatpush2.bf16.msra.mxu0 0
  %232 = vmatprep.subr.bf16.mxu0 0
  %233 = vmatpush2.bf16.msra.mxu0 0
  %234 = vmatprep.subr.bf16.mxu0 0
  %235 = vmatpush2.bf16.msra.mxu0 0
  %236 = vmatprep.mubr.bf16.mxu0 0
  %237 = vmatmul.mubr.bf16.gmra.mxu0 %v196
  %v238 = vpop.f32.mrf.mxu0
  %v239 = vadd.f32 %v150, %v238
  %v240 = vpop.f32.mrf.mxu0
  %v241 = vpop.f32.mrf.mxu0
  %v242 = vadd.f32 %v153, %v241
  %v243 = vpop.f32.mrf.mxu0
  %244 = vmatprep.mubr.bf16.mxu0 0
  %245 = vmatmul.mubr.bf16.gmra.mxu0 %v199
  %v246 = vpop.f32.mrf.mxu0
  %v247 = vadd.f32 %v158, %v246
  %v248 = vpop.f32.mrf.mxu0
  %v249 = vpop.f32.mrf.mxu0
  %v250 = vadd.f32 %v161, %v249
  %v251 = vpop.f32.mrf.mxu0
  %252 = vmatprep.mubr.bf16.mxu0 0
  %253 = vmatmul.mubr.bf16.gmra.mxu0 %v202
  %v254 = vpop.f32.mrf.mxu0
  %v255 = vadd.f32 %v166, %v254
  %v256 = vpop.f32.mrf.mxu0
  %v257 = vpop.f32.mrf.mxu0
  %v258 = vpop.f32.mrf.mxu0
  %259 = vdwg.mxu0
  %v260 = vld [vmem:[#allocation2 + $0x2] sm:$0xff]
  %v261 = vld [vmem:[#allocation2 + $0xa] sm:$0xff]
  %v262 = vld [vmem:[#allocation2 + $0x12] sm:$0xff]
  %v263 = vld [vmem:[#allocation2 + $0x1a] sm:$0xff]
  %v264 = vld [vmem:[#allocation2 + $0x22] sm:$0x3]
  %v265 = vpack.c.bf16 %v261, %v260
  %v266 = vpack.c.bf16 %v263, %v262
  %v267 = vpack.c.bf16 %v264, %v264
  %s268 = scalar_lea.vmem %s1, 64
  %v269 = vld [vmem:[%s268] sm:$0xf]
  %v270 = vld [vmem:[%s268 + $0x4] sm:$0xf]
  %v271 = vld [vmem:[%s268 + $0x8] sm:$0xf]
  %v272 = vld [vmem:[%s268 + $0xc] sm:$0xf]
  %v273 = vld [vmem:[%s268 + $0x10] sm:$0xf]
  %v274 = vld [vmem:[%s268 + $0x14] sm:$0xf]
  %v275 = vld [vmem:[%s268 + $0x18] sm:$0xf]
  %v276 = vld [vmem:[%s268 + $0x1c] sm:$0xf]
  %v285 = vunpack.c.l.b16 %v269
  %v286 = vunpack.c.l.b16 %v270
  %v287 = vunpack.c.l.b16 %v271
  %v288 = vunpack.c.l.b16 %v272
  %v289 = vunpack.c.l.b16 %v273
  %v290 = vunpack.c.l.b16 %v274
  %v291 = vunpack.c.l.b16 %v275
  %v292 = vunpack.c.l.b16 %v276
  %v293 = vpack.c.b16 %v286, %v285
  %v294 = vpack.c.b16 %v288, %v287
  %v295 = vpack.c.b16 %v290, %v289
  %v296 = vpack.c.b16 %v292, %v291
  %v302 = vsel %vm24, %v265, 0
  %v305 = vsel %vm24, %v266, 0
  %v308 = vsel %vm24, %v267, 0
  %310 = vmatprep.subr.bf16.mxu0 0
  %311 = vmatpush1.bf16.msra.mxu0 0
  %312 = vmatprep.subr.bf16.mxu0 0
  %313 = vmatpush1.bf16.msra.mxu0 0
  %314 = vmatprep.subr.bf16.mxu0 0
  %315 = vmatpush1.bf16.msra.mxu0 0
  %316 = vmatprep.subr.bf16.mxu0 0
  %317 = vmatpush1.bf16.msra.mxu0 0
  %318 = vmatprep.subr.bf16.mxu0 0
  %319 = vmatpush1.bf16.msra.mxu0 %v296
  %320 = vmatprep.subr.bf16.mxu0 0
  %321 = vmatpush1.bf16.msra.mxu0 %v295
  %322 = vmatprep.subr.bf16.mxu0 0
  %323 = vmatpush1.bf16.msra.mxu0 %v294
  %324 = vmatprep.subr.bf16.mxu0 0
  %325 = vmatpush1.bf16.msra.mxu0 %v293
  %326 = vmatprep.subr.bf16.mxu0 0
  %327 = vmatpush2.bf16.msra.mxu0 0
  %328 = vmatprep.subr.bf16.mxu0 0
  %329 = vmatpush2.bf16.msra.mxu0 0
  %330 = vmatprep.subr.bf16.mxu0 0
  %331 = vmatpush2.bf16.msra.mxu0 0
  %332 = vmatprep.subr.bf16.mxu0 0
  %333 = vmatpush2.bf16.msra.mxu0 0
  %334 = vmatprep.subr.bf16.mxu0 0
  %335 = vmatpush2.bf16.msra.mxu0 0
  %336 = vmatprep.subr.bf16.mxu0 0
  %337 = vmatpush2.bf16.msra.mxu0 0
  %338 = vmatprep.subr.bf16.mxu0 0
  %339 = vmatpush2.bf16.msra.mxu0 0
  %340 = vmatprep.subr.bf16.mxu0 0
  %341 = vmatpush2.bf16.msra.mxu0 0
  %342 = vmatprep.mubr.bf16.mxu0 0
  %343 = vmatmul.mubr.bf16.gmra.mxu0 %v302
  %v344 = vpop.f32.mrf.mxu0
  %v345 = vadd.f32 0.0, %v344
  %v346 = vpop.f32.mrf.mxu0
  %v347 = vpop.f32.mrf.mxu0
  %v348 = vadd.f32 0.0, %v347
  %v349 = vpop.f32.mrf.mxu0
  %350 = vmatprep.mubr.bf16.mxu0 0
  %351 = vmatmul.mubr.bf16.gmra.mxu0 %v305
  %v352 = vpop.f32.mrf.mxu0
  %v353 = vadd.f32 0.0, %v352
  %v354 = vpop.f32.mrf.mxu0
  %v355 = vpop.f32.mrf.mxu0
  %v356 = vadd.f32 0.0, %v355
  %v357 = vpop.f32.mrf.mxu0
  %358 = vmatprep.mubr.bf16.mxu0 0
  %359 = vmatmul.mubr.bf16.gmra.mxu0 %v308
  %v360 = vpop.f32.mrf.mxu0
  %v361 = vadd.f32 0.0, %v360
  %v362 = vpop.f32.mrf.mxu0
  %v363 = vpop.f32.mrf.mxu0
  %v364 = vpop.f32.mrf.mxu0
  %365 = vdwg.mxu0
  %v366 = vadd.f32 %v239, %v345
  %v367 = vadd.f32 %v242, %v348
  %v368 = vadd.f32 %v247, %v353
  %v369 = vadd.f32 %v250, %v356
  %v370 = vadd.f32 %v255, %v361
  %v371 = vld [vmem:[%s2] sm:$0x1]
  %v373 = vlaneseq
  %v374 = vshrl.u32 %v373, 7
  %v375 = vsub.s32 0, %v374
  %v376 = vrot.slane %v371, %v375
  %v378 = vadd.f32 %v366, %v376
  %v379 = vadd.f32 %v367, %v376
  %v380 = vadd.f32 %v368, %v376
  %v381 = vadd.f32 %v369, %v376
  %v382 = vadd.f32 %v370, %v376
  %v383 = vmax.f32 %v378, 0.0
  %v384 = vmax.f32 %v379, 0.0
  %v385 = vmax.f32 %v380, 0.0
  %v386 = vmax.f32 %v381, 0.0
  %v387 = vmax.f32 %v382, 0.0
  %v388 = vld [vmem:[%s5] sm:$0xff]
  %v389 = vld [vmem:[%s5 + $0x8] sm:$0xff]
  %v390 = vld [vmem:[%s5 + $0x10] sm:$0xff]
  %v391 = vld [vmem:[%s5 + $0x18] sm:$0xff]
  %v392 = vld [vmem:[%s5 + $0x20] sm:$0x3]
  %394 = vset.pattern.permute.xlu0 0
  %395 = vperm.xlu0 %394, %v388
  %v396 = vpop.permute.xlu0 %395
  %399 = vset.pattern.permute.xlu0 0
  %400 = vperm.xlu0 %399, %v389
  %v401 = vpop.permute.xlu0 %400
  %404 = vset.pattern.permute.xlu0 0
  %405 = vperm.xlu0 %404, %v390
  %v406 = vpop.permute.xlu0 %405
  %409 = vset.pattern.permute.xlu0 0
  %410 = vperm.xlu0 %409, %v391
  %v411 = vpop.permute.xlu0 %410
  %414 = vset.pattern.permute.xlu0 0
  %415 = vperm.xlu0 %414, %v392
  %v416 = vpop.permute.xlu0 %415
  %v418 = vmul.f32 %v383, %v396
  %v419 = vmul.f32 %v384, %v401
  %v420 = vmul.f32 %v385, %v406
  %v421 = vmul.f32 %v386, %v411
  %v422 = vmul.f32 %v387, %v416
  %423 = vst [vmem:[#allocation3 + $0x1] sm:$0xff] %v418
  %424 = vst [vmem:[#allocation3 + $0x9] sm:$0xff] %v419
  %425 = vst [vmem:[#allocation3 + $0x11] sm:$0xff] %v420
  %426 = vst [vmem:[#allocation3 + $0x19] sm:$0xff] %v421
  %427 = vst [vmem:[#allocation3 + $0x21] sm:$0x3] %v422
  %v428 = vld [vmem:[#allocation3] sm:$0xff]
  %v429 = vld [vmem:[#allocation3 + $0x8] sm:$0xff]
  %v430 = vld [vmem:[#allocation3 + $0x10] sm:$0xff]
  %v431 = vld [vmem:[#allocation3 + $0x18] sm:$0xff]
  %v432 = vld [vmem:[#allocation3 + $0x20] sm:$0x3]
  %v433 = vpack.c.bf16 %v429, %v428
  %v434 = vpack.c.bf16 %v431, %v430
  %v435 = vpack.c.bf16 %v432, %v432
  %v436 = vld [vmem:[%s3] sm:$0xf]
  %v437 = vld [vmem:[%s3 + $0x4] sm:$0xf]
  %v438 = vld [vmem:[%s3 + $0x8] sm:$0xf]
  %v439 = vld [vmem:[%s3 + $0xc] sm:$0xf]
  %v440 = vld [vmem:[%s3 + $0x10] sm:$0xf]
  %v441 = vld [vmem:[%s3 + $0x14] sm:$0xf]
  %v442 = vld [vmem:[%s3 + $0x18] sm:$0xf]
  %v443 = vld [vmem:[%s3 + $0x1c] sm:$0xf]
  %v444 = vld [vmem:[%s3 + $0x20] sm:$0xf]
  %v445 = vld [vmem:[%s3 + $0x24] sm:$0xf]
  %v446 = vld [vmem:[%s3 + $0x28] sm:$0xf]
  %v447 = vld [vmem:[%s3 + $0x2c] sm:$0xf]
  %v448 = vld [vmem:[%s3 + $0x30] sm:$0xf]
  %v449 = vld [vmem:[%s3 + $0x34] sm:$0xf]
  %v450 = vld [vmem:[%s3 + $0x38] sm:$0xf]
  %v451 = vld [vmem:[%s3 + $0x3c] sm:$0xf]
  %v452 = vld [vmem:[#allocation3 + $0x1] sm:$0xff]
  %v453 = vld [vmem:[#allocation3 + $0x9] sm:$0xff]
  %v454 = vld [vmem:[#allocation3 + $0x11] sm:$0xff]
  %v455 = vld [vmem:[#allocation3 + $0x19] sm:$0xff]
  %v456 = vld [vmem:[#allocation3 + $0x21] sm:$0x3]
  %v457 = vpack.c.bf16 %v453, %v452
  %v458 = vpack.c.bf16 %v455, %v454
  %v459 = vpack.c.bf16 %v456, %v456
  %s460 = scalar_lea.vmem %s3, 64
  %v461 = vld [vmem:[%s460] sm:$0xf]
  %v462 = vld [vmem:[%s460 + $0x4] sm:$0xf]
  %v463 = vld [vmem:[%s460 + $0x8] sm:$0xf]
  %v464 = vld [vmem:[%s460 + $0xc] sm:$0xf]
  %v465 = vld [vmem:[%s460 + $0x10] sm:$0xf]
  %v466 = vld [vmem:[%s460 + $0x14] sm:$0xf]
  %v467 = vld [vmem:[%s460 + $0x18] sm:$0xf]
  %v468 = vld [vmem:[%s460 + $0x1c] sm:$0xf]
  %v469 = vld [vmem:[%s460 + $0x20] sm:$0xf]
  %v470 = vld [vmem:[%s460 + $0x24] sm:$0xf]
  %v471 = vld [vmem:[%s460 + $0x28] sm:$0xf]
  %v472 = vld [vmem:[%s460 + $0x2c] sm:$0xf]
  %v473 = vld [vmem:[%s460 + $0x30] sm:$0xf]
  %v474 = vld [vmem:[%s460 + $0x34] sm:$0xf]
  %v475 = vld [vmem:[%s460 + $0x38] sm:$0xf]
  %v476 = vld [vmem:[%s460 + $0x3c] sm:$0xf]
  %v493 = vunpack.c.l.b16 %v461
  %v494 = vunpack.c.l.b16 %v462
  %v495 = vunpack.c.l.b16 %v463
  %v496 = vunpack.c.l.b16 %v464
  %v497 = vunpack.c.l.b16 %v465
  %v498 = vunpack.c.l.b16 %v466
  %v499 = vunpack.c.l.b16 %v467
  %v500 = vunpack.c.l.b16 %v468
  %v501 = vunpack.c.l.b16 %v469
  %v502 = vunpack.c.l.b16 %v470
  %v503 = vunpack.c.l.b16 %v471
  %v504 = vunpack.c.l.b16 %v472
  %v505 = vunpack.c.l.b16 %v473
  %v506 = vunpack.c.l.b16 %v474
  %v507 = vunpack.c.l.b16 %v475
  %v508 = vunpack.c.l.b16 %v476
  %v509 = vpack.c.b16 %v494, %v493
  %v510 = vpack.c.b16 %v496, %v495
  %v511 = vpack.c.b16 %v498, %v497
  %v512 = vpack.c.b16 %v500, %v499
  %v513 = vpack.c.b16 %v502, %v501
  %v514 = vpack.c.b16 %v504, %v503
  %v515 = vpack.c.b16 %v506, %v505
  %v516 = vpack.c.b16 %v508, %v507
  %525 = vmatprep.subr.bf16.mxu0 0
  %526 = vmatpush1.bf16.msra.mxu0 %v516
  %527 = vmatprep.subr.bf16.mxu0 0
  %528 = vmatpush1.bf16.msra.mxu0 %v515
  %529 = vmatprep.subr.bf16.mxu0 0
  %530 = vmatpush1.bf16.msra.mxu0 %v514
  %531 = vmatprep.subr.bf16.mxu0 0
  %532 = vmatpush1.bf16.msra.mxu0 %v513
  %533 = vmatprep.subr.bf16.mxu0 0
  %534 = vmatpush1.bf16.msra.mxu0 %v512
  %535 = vmatprep.subr.bf16.mxu0 0
  %536 = vmatpush1.bf16.msra.mxu0 %v511
  %537 = vmatprep.subr.bf16.mxu0 0
  %538 = vmatpush1.bf16.msra.mxu0 %v510
  %539 = vmatprep.subr.bf16.mxu0 0
  %540 = vmatpush1.bf16.msra.mxu0 %v509
  %541 = vmatprep.subr.bf16.mxu0 0
  %542 = vmatpush2.bf16.msra.mxu0 0
  %543 = vmatprep.subr.bf16.mxu0 0
  %544 = vmatpush2.bf16.msra.mxu0 0
  %545 = vmatprep.subr.bf16.mxu0 0
  %546 = vmatpush2.bf16.msra.mxu0 0
  %547 = vmatprep.subr.bf16.mxu0 0
  %548 = vmatpush2.bf16.msra.mxu0 0
  %549 = vmatprep.subr.bf16.mxu0 0
  %550 = vmatpush2.bf16.msra.mxu0 0
  %551 = vmatprep.subr.bf16.mxu0 0
  %552 = vmatpush2.bf16.msra.mxu0 0
  %553 = vmatprep.subr.bf16.mxu0 0
  %554 = vmatpush2.bf16.msra.mxu0 0
  %555 = vmatprep.subr.bf16.mxu0 0
  %556 = vmatpush2.bf16.msra.mxu0 0
  %557 = vmatprep.mubr.bf16.mxu0 0
  %558 = vmatmul.mubr.bf16.gmra.mxu0 %v457
  %v559 = vpop.f32.mrf.mxu0
  %v560 = vadd.f32 0.0, %v559
  %v561 = vpop.f32.mrf.mxu0
  %v562 = vpop.f32.mrf.mxu0
  %v563 = vadd.f32 0.0, %v562
  %v564 = vpop.f32.mrf.mxu0
  %565 = vmatprep.mubr.bf16.mxu0 0
  %566 = vmatmul.mubr.bf16.gmra.mxu0 %v458
  %v567 = vpop.f32.mrf.mxu0
  %v568 = vadd.f32 0.0, %v567
  %v569 = vpop.f32.mrf.mxu0
  %v570 = vpop.f32.mrf.mxu0
  %v571 = vadd.f32 0.0, %v570
  %v572 = vpop.f32.mrf.mxu0
  %573 = vmatprep.mubr.bf16.mxu0 0
  %574 = vmatmul.mubr.bf16.gmra.mxu0 %v459
  %v575 = vpop.f32.mrf.mxu0
  %v576 = vadd.f32 0.0, %v575
  %v577 = vpop.f32.mrf.mxu0
  %v578 = vpop.f32.mrf.mxu0
  %v579 = vpop.f32.mrf.mxu0
  %580 = vdwg.mxu0
  %v597 = vunpack.c.l.b16 %v436
  %v598 = vunpack.c.l.b16 %v437
  %v599 = vunpack.c.l.b16 %v438
  %v600 = vunpack.c.l.b16 %v439
  %v601 = vunpack.c.l.b16 %v440
  %v602 = vunpack.c.l.b16 %v441
  %v603 = vunpack.c.l.b16 %v442
  %v604 = vunpack.c.l.b16 %v443
  %v605 = vunpack.c.l.b16 %v444
  %v606 = vunpack.c.l.b16 %v445
  %v607 = vunpack.c.l.b16 %v446
  %v608 = vunpack.c.l.b16 %v447
  %v609 = vunpack.c.l.b16 %v448
  %v610 = vunpack.c.l.b16 %v449
  %v611 = vunpack.c.l.b16 %v450
  %v612 = vunpack.c.l.b16 %v451
  %v613 = vpack.c.b16 %v598, %v597
  %v614 = vpack.c.b16 %v600, %v599
  %v615 = vpack.c.b16 %v602, %v601
  %v616 = vpack.c.b16 %v604, %v603
  %v617 = vpack.c.b16 %v606, %v605
  %v618 = vpack.c.b16 %v608, %v607
  %v619 = vpack.c.b16 %v610, %v609
  %v620 = vpack.c.b16 %v612, %v611
  %629 = vmatprep.subr.bf16.mxu0 0
  %630 = vmatpush1.bf16.msra.mxu0 %v620
  %631 = vmatprep.subr.bf16.mxu0 0
  %632 = vmatpush1.bf16.msra.mxu0 %v619
  %633 = vmatprep.subr.bf16.mxu0 0
  %634 = vmatpush1.bf16.msra.mxu0 %v618
  %635 = vmatprep.subr.bf16.mxu0 0
  %636 = vmatpush1.bf16.msra.mxu0 %v617
  %637 = vmatprep.subr.bf16.mxu0 0
  %638 = vmatpush1.bf16.msra.mxu0 %v616
  %639 = vmatprep.subr.bf16.mxu0 0
  %640 = vmatpush1.bf16.msra.mxu0 %v615
  %641 = vmatprep.subr.bf16.mxu0 0
  %642 = vmatpush1.bf16.msra.mxu0 %v614
  %643 = vmatprep.subr.bf16.mxu0 0
  %644 = vmatpush1.bf16.msra.mxu0 %v613
  %645 = vmatprep.subr.bf16.mxu0 0
  %646 = vmatpush2.bf16.msra.mxu0 0
  %647 = vmatprep.subr.bf16.mxu0 0
  %648 = vmatpush2.bf16.msra.mxu0 0
  %649 = vmatprep.subr.bf16.mxu0 0
  %650 = vmatpush2.bf16.msra.mxu0 0
  %651 = vmatprep.subr.bf16.mxu0 0
  %652 = vmatpush2.bf16.msra.mxu0 0
  %653 = vmatprep.subr.bf16.mxu0 0
  %654 = vmatpush2.bf16.msra.mxu0 0
  %655 = vmatprep.subr.bf16.mxu0 0
  %656 = vmatpush2.bf16.msra.mxu0 0
  %657 = vmatprep.subr.bf16.mxu0 0
  %658 = vmatpush2.bf16.msra.mxu0 0
  %659 = vmatprep.subr.bf16.mxu0 0
  %660 = vmatpush2.bf16.msra.mxu0 0
  %661 = vmatprep.mubr.bf16.mxu0 0
  %662 = vmatmul.mubr.bf16.gmra.mxu0 %v433
  %v663 = vpop.f32.mrf.mxu0
  %v664 = vadd.f32 %v560, %v663
  %v665 = vpop.f32.mrf.mxu0
  %v666 = vpop.f32.mrf.mxu0
  %v667 = vadd.f32 %v563, %v666
  %v668 = vpop.f32.mrf.mxu0
  %669 = vmatprep.mubr.bf16.mxu0 0
  %670 = vmatmul.mubr.bf16.gmra.mxu0 %v434
  %v671 = vpop.f32.mrf.mxu0
  %v672 = vadd.f32 %v568, %v671
  %v673 = vpop.f32.mrf.mxu0
  %v674 = vpop.f32.mrf.mxu0
  %v675 = vadd.f32 %v571, %v674
  %v676 = vpop.f32.mrf.mxu0
  %677 = vmatprep.mubr.bf16.mxu0 0
  %678 = vmatmul.mubr.bf16.gmra.mxu0 %v435
  %v679 = vpop.f32.mrf.mxu0
  %v680 = vadd.f32 %v576, %v679
  %v681 = vpop.f32.mrf.mxu0
  %v682 = vpop.f32.mrf.mxu0
  %v683 = vpop.f32.mrf.mxu0
  %684 = vdwg.mxu0
  %v685 = vld [vmem:[#allocation3 + $0x2] sm:$0xff]
  %v686 = vld [vmem:[#allocation3 + $0xa] sm:$0xff]
  %v687 = vld [vmem:[#allocation3 + $0x12] sm:$0xff]
  %v688 = vld [vmem:[#allocation3 + $0x1a] sm:$0xff]
  %v689 = vld [vmem:[#allocation3 + $0x22] sm:$0x3]
  %v690 = vpack.c.bf16 %v686, %v685
  %v691 = vpack.c.bf16 %v688, %v687
  %v692 = vpack.c.bf16 %v689, %v689
  %s693 = scalar_lea.vmem %s3, 128
  %v694 = vld [vmem:[%s693] sm:$0xf]
  %v695 = vld [vmem:[%s693 + $0x4] sm:$0xf]
  %v696 = vld [vmem:[%s693 + $0x8] sm:$0xf]
  %v697 = vld [vmem:[%s693 + $0xc] sm:$0xf]
  %v698 = vld [vmem:[%s693 + $0x10] sm:$0xf]
  %v699 = vld [vmem:[%s693 + $0x14] sm:$0xf]
  %v700 = vld [vmem:[%s693 + $0x18] sm:$0xf]
  %v701 = vld [vmem:[%s693 + $0x1c] sm:$0xf]
  %v702 = vld [vmem:[%s693 + $0x20] sm:$0xf]
  %v703 = vld [vmem:[%s693 + $0x24] sm:$0xf]
  %v704 = vld [vmem:[%s693 + $0x28] sm:$0xf]
  %v705 = vld [vmem:[%s693 + $0x2c] sm:$0xf]
  %v706 = vld [vmem:[%s693 + $0x30] sm:$0xf]
  %v707 = vld [vmem:[%s693 + $0x34] sm:$0xf]
  %v708 = vld [vmem:[%s693 + $0x38] sm:$0xf]
  %v709 = vld [vmem:[%s693 + $0x3c] sm:$0xf]
  %v726 = vunpack.c.l.b16 %v694
  %v727 = vunpack.c.l.b16 %v695
  %v728 = vunpack.c.l.b16 %v696
  %v729 = vunpack.c.l.b16 %v697
  %v730 = vunpack.c.l.b16 %v698
  %v731 = vunpack.c.l.b16 %v699
  %v732 = vunpack.c.l.b16 %v700
  %v733 = vunpack.c.l.b16 %v701
  %v734 = vunpack.c.l.b16 %v702
  %v735 = vunpack.c.l.b16 %v703
  %v736 = vunpack.c.l.b16 %v704
  %v737 = vunpack.c.l.b16 %v705
  %v738 = vunpack.c.l.b16 %v706
  %v739 = vunpack.c.l.b16 %v707
  %v740 = vunpack.c.l.b16 %v708
  %v741 = vunpack.c.l.b16 %v709
  %v742 = vpack.c.b16 %v727, %v726
  %v743 = vpack.c.b16 %v729, %v728
  %v744 = vpack.c.b16 %v731, %v730
  %v745 = vpack.c.b16 %v733, %v732
  %v746 = vpack.c.b16 %v735, %v734
  %v747 = vpack.c.b16 %v737, %v736
  %v748 = vpack.c.b16 %v739, %v738
  %v749 = vpack.c.b16 %v741, %v740
  %758 = vmatprep.subr.bf16.mxu0 0
  %759 = vmatpush1.bf16.msra.mxu0 %v749
  %760 = vmatprep.subr.bf16.mxu0 0
  %761 = vmatpush1.bf16.msra.mxu0 %v748
  %762 = vmatprep.subr.bf16.mxu0 0
  %763 = vmatpush1.bf16.msra.mxu0 %v747
  %764 = vmatprep.subr.bf16.mxu0 0
  %765 = vmatpush1.bf16.msra.mxu0 %v746
  %766 = vmatprep.subr.bf16.mxu0 0
  %767 = vmatpush1.bf16.msra.mxu0 %v745
  %768 = vmatprep.subr.bf16.mxu0 0
  %769 = vmatpush1.bf16.msra.mxu0 %v744
  %770 = vmatprep.subr.bf16.mxu0 0
  %771 = vmatpush1.bf16.msra.mxu0 %v743
  %772 = vmatprep.subr.bf16.mxu0 0
  %773 = vmatpush1.bf16.msra.mxu0 %v742
  %774 = vmatprep.subr.bf16.mxu0 0
  %775 = vmatpush2.bf16.msra.mxu0 0
  %776 = vmatprep.subr.bf16.mxu0 0
  %777 = vmatpush2.bf16.msra.mxu0 0
  %778 = vmatprep.subr.bf16.mxu0 0
  %779 = vmatpush2.bf16.msra.mxu0 0
  %780 = vmatprep.subr.bf16.mxu0 0
  %781 = vmatpush2.bf16.msra.mxu0 0
  %782 = vmatprep.subr.bf16.mxu0 0
  %783 = vmatpush2.bf16.msra.mxu0 0
  %784 = vmatprep.subr.bf16.mxu0 0
  %785 = vmatpush2.bf16.msra.mxu0 0
  %786 = vmatprep.subr.bf16.mxu0 0
  %787 = vmatpush2.bf16.msra.mxu0 0
  %788 = vmatprep.subr.bf16.mxu0 0
  %789 = vmatpush2.bf16.msra.mxu0 0
  %790 = vmatprep.mubr.bf16.mxu0 0
  %791 = vmatmul.mubr.bf16.gmra.mxu0 %v690
  %v792 = vpop.f32.mrf.mxu0
  %v793 = vadd.f32 0.0, %v792
  %v794 = vpop.f32.mrf.mxu0
  %v795 = vpop.f32.mrf.mxu0
  %v796 = vadd.f32 0.0, %v795
  %v797 = vpop.f32.mrf.mxu0
  %798 = vmatprep.mubr.bf16.mxu0 0
  %799 = vmatmul.mubr.bf16.gmra.mxu0 %v691
  %v800 = vpop.f32.mrf.mxu0
  %v801 = vadd.f32 0.0, %v800
  %v802 = vpop.f32.mrf.mxu0
  %v803 = vpop.f32.mrf.mxu0
  %v804 = vadd.f32 0.0, %v803
  %v805 = vpop.f32.mrf.mxu0
  %806 = vmatprep.mubr.bf16.mxu0 0
  %807 = vmatmul.mubr.bf16.gmra.mxu0 %v692
  %v808 = vpop.f32.mrf.mxu0
  %v809 = vadd.f32 0.0, %v808
  %v810 = vpop.f32.mrf.mxu0
  %v811 = vpop.f32.mrf.mxu0
  %v812 = vpop.f32.mrf.mxu0
  %813 = vdwg.mxu0
  %v814 = vadd.f32 %v664, %v793
  %v815 = vadd.f32 %v667, %v796
  %v816 = vadd.f32 %v672, %v801
  %v817 = vadd.f32 %v675, %v804
  %v818 = vadd.f32 %v680, %v809
  %v819 = vld [vmem:[%s4] sm:$0x1]
  %v821 = vlaneseq
  %v822 = vshrl.u32 %v821, 7
  %v823 = vsub.s32 0, %v822
  %v824 = vrot.slane %v819, %v823
  %v826 = vadd.f32 %v814, %v824
  %v827 = vadd.f32 %v815, %v824
  %v828 = vadd.f32 %v816, %v824
  %v829 = vadd.f32 %v817, %v824
  %v830 = vadd.f32 %v818, %v824
  %v831 = vmax.f32 %v826, 0.0
  %v832 = vmax.f32 %v827, 0.0
  %v833 = vmax.f32 %v828, 0.0
  %v834 = vmax.f32 %v829, 0.0
  %v835 = vmax.f32 %v830, 0.0
  %836 = vst [vmem:[%s6] sm:$0xff] %v831
  %837 = vst [vmem:[%s6 + $0x8] sm:$0xff] %v832
  %s838 = scalar_lea.vmem %s6, 16
  %839 = vst [vmem:[%s838 - $0x2] sm:$0xfc] %v833
  %840 = vst [vmem:[%s838 + $0x6] sm:$0xff] %v834
  %841 = vst [vmem:[%s838 + $0xe] sm:$0x3] %v835
  // Predicated region
  $region26: #{conv_block_forward.1} parent=0 // pred_check
    _
  $region27: #{conv_block_forward.1} parent=0 // pred_check_branch
    %843 = sbr.rel (0) target = $region29
  $region28: #{conv_block_forward.1} parent=0 // pred_region
    _
  $region29: #{conv_block_forward.1} parent=0 // pred_fallthru
    _
  // Predicated region
  $region30: #{conv_block_forward.1} parent=0 // pred_check
    _
  $region31: #{conv_block_forward.1} parent=0 // pred_check_branch
    %845 = sbr.rel (0) target = $region33
  $region32: #{conv_block_forward.1} parent=0 // pred_region
    _
  $region33: #{conv_block_forward.1} parent=0 // pred_fallthru
    _

</llo_original>
